<compile_context>
chip_gen: v6e
topology: v6e:2x2x1
jax: 0.10.0
libtpu: 0.0.40
codegen_flags: <defaults>
</compile_context>

<pallas_src>
import functools
import math

import jax
import jax.numpy as jnp
import numpy as np
from jax.experimental import pallas as pl
from jax.experimental.pallas import tpu as pltpu


def sdpa_kernel(xq_ref, xk_ref, xv_ref,            # flattened activations (rows, d_model)
                wq_ref, bq_ref,                     # Q projection (scale pre-folded), bf16 / f32
                wk_ref, bk_ref,                     # K projection, bf16 / f32
                wv_ref, bv_ref,                     # V projection, bf16 / f32
                wo_ref, bo_ref,                     # output projection, bf16 / f32
                o_ref,                              # (b_tile*nq, d_model)
                *, b_tile, nq, nk, d_k, d_v):
    f32 = jnp.float32
    bf16 = jnp.bfloat16
    mq = b_tile * nq

    # --- Projections: three dense matmuls (bf16 operands, f32 accumulate) ----
    q = jnp.dot(xq_ref[...].astype(bf16), wq_ref[...],
                preferred_element_type=f32) + bq_ref[...]          # pre-scaled
    k = jnp.dot(xk_ref[...].astype(bf16), wk_ref[...],
                preferred_element_type=f32) + bk_ref[...]
    v = jnp.dot(xv_ref[...].astype(bf16), wv_ref[...],
                preferred_element_type=f32) + bv_ref[...]

    q = q.reshape(b_tile, nq, d_k)
    k = k.reshape(b_tile, nk, d_k)
    v = v.reshape(b_tile, nk, d_v)

    # --- Scores: NT contraction (no explicit transpose of k) -----------------
    att = jnp.einsum('bqd,bkd->bqk', q.astype(bf16), k.astype(bf16),
                     preferred_element_type=f32)                    # (b_tile, nq, nk)

    # TODO(synk): attention_mask / attention_weights (None in this config) and
    # training-mode dropout (identity at inference) are not implemented.

    # --- Numerically-stable softmax; elementwise math kept in f32 ------------
    m = jnp.max(att, axis=-1, keepdims=True)
    e = jnp.exp(att - m)
    p = e * pl.reciprocal(jnp.sum(e, axis=-1, keepdims=True), approx=True)

    # --- att @ V, then output projection (fc_o) on flattened rows ------------
    ctx = jnp.einsum('bqk,bkd->bqd', p.astype(bf16), v.astype(bf16),
                     preferred_element_type=f32)                    # (b_tile, nq, d_v)
    out = jnp.dot(ctx.reshape(mq, d_v).astype(bf16), wo_ref[...],
                  preferred_element_type=f32) + bo_ref[...]
    o_ref[...] = out.astype(o_ref.dtype)


def scaled_dot_product_attention(queries, keys, values, params, *, b_tile=None):
    """queries/keys/values: (b_s, nq/nk, d_model); params: dict of W/b arrays."""
    b_s, nq, d_model = queries.shape
    nk = keys.shape[1]
    d_k = params["wq"].shape[1]
    d_v = params["wv"].shape[1]

    if b_tile is None:
        b_tile = b_s                  # small b_s: one grid step holds everything
    assert b_s % b_tile == 0, "b_tile must divide b_s"
    n_tiles = b_s // b_tile

    # Host-side weight prep: fold 1/sqrt(d_k) into the Q projection; weights in
    # bf16 (f32 accumulation happens on the MXU), biases added in f32.
    scale = 1.0 / math.sqrt(d_k)
    wq = (params["wq"] * scale).astype(jnp.bfloat16)               # (d_model, d_k)
    bq = (params["bq"] * scale).astype(jnp.float32)                # (1, d_k)
    wk = params["wk"].astype(jnp.bfloat16)                         # (d_model, d_k)
    bk = params["bk"].astype(jnp.float32)                          # (1, d_k)
    wv = params["wv"].astype(jnp.bfloat16)                         # (d_model, d_v)
    bv = params["bv"].astype(jnp.float32)                          # (1, d_v)
    wo = params["wo"].astype(jnp.bfloat16)                         # (d_v, d_model)
    bo = params["bo"].astype(jnp.float32)                          # (1, d_model)

    # Flatten activations so the projections see (rows, d_model) with rows a
    # multiple of 8 (sublane-aligned loads & stores).
    xq = queries.reshape(b_s * nq, d_model)
    xk = keys.reshape(b_s * nk, d_model)
    xv = values.reshape(b_s * nk, d_model)

    kernel = functools.partial(
        sdpa_kernel, b_tile=b_tile, nq=nq, nk=nk, d_k=d_k, d_v=d_v)

    def row_spec(rows_per_tile, cols):
        return pl.BlockSpec((rows_per_tile, cols), lambda b: (b, 0))

    def const_spec(r, c):
        # Grid-invariant weight/bias block (constant index_map).
        return pl.BlockSpec((r, c), lambda b: (0, 0))

    out_flat = pl.pallas_call(
        kernel,
        out_shape=jax.ShapeDtypeStruct((b_s * nq, d_model), queries.dtype),
        grid=(n_tiles,),
        in_specs=[
            row_spec(b_tile * nq, d_model),   # queries (flattened)
            row_spec(b_tile * nk, d_model),   # keys
            row_spec(b_tile * nk, d_model),   # values
            const_spec(d_model, d_k),         # W_q (bf16, pre-scaled)
            const_spec(1, d_k),               # b_q (f32, pre-scaled)
            const_spec(d_model, d_k),         # W_k (bf16)
            const_spec(1, d_k),               # b_k (f32)
            const_spec(d_model, d_v),         # W_v (bf16)
            const_spec(1, d_v),               # b_v (f32)
            const_spec(d_v, d_model),         # W_o (bf16)
            const_spec(1, d_model),           # b_o (f32)
        ],
        out_specs=row_spec(b_tile * nq, d_model),
        compiler_params=pltpu.CompilerParams(
            dimension_semantics=("parallel",)),
    )(xq, xk, xv, wq, bq, wk, bk, wv, bv, wo, bo)

    return out_flat.reshape(b_s, nq, d_model)


def xavier_normal(key, fan_in, fan_out, dtype=jnp.float32):
    # nn.init.xavier_normal_: std = gain * sqrt(2 / (fan_in + fan_out)), gain=1
    std = math.sqrt(2.0 / (fan_in + fan_out))
    return std * jax.random.normal(key, (fan_in, fan_out), dtype=dtype)


def init_params(key, d_model, d_k, d_v):
    kq, kk, kv, ko = jax.random.split(key, 4)
    return {
        "wq": xavier_normal(kq, d_model, d_k),
        "bq": jnp.zeros((1, d_k), jnp.float32),
        "wk": xavier_normal(kk, d_model, d_k),
        "bk": jnp.zeros((1, d_k), jnp.float32),
        "wv": xavier_normal(kv, d_model, d_v),
        "bv": jnp.zeros((1, d_v), jnp.float32),
        "wo": xavier_normal(ko, d_v, d_model),
        "bo": jnp.zeros((1, d_model), jnp.float32),
    }


def reference(queries, keys, values, params, d_k):
    # Faithful f32 re-implementation of the PyTorch forward (no mask/dropout).
    q = queries @ params["wq"] + params["bq"]
    k = keys @ params["wk"] + params["bk"]
    v = values @ params["wv"] + params["bv"]
    att = jnp.einsum("bqd,bkd->bqk", q, k) / math.sqrt(d_k)
    att = jax.nn.softmax(att, axis=-1)
    out = jnp.einsum("bqk,bkd->bqd", att, v)
    return out @ params["wo"] + params["bo"]


if __name__ == "__main__":
    b_s, nq, nk = 2, 8, 8
    d_model, d_k, d_v = 32, 32, 32

    key = jax.random.PRNGKey(0)
    kp, kq, kk, kv = jax.random.split(key, 4)
    params = init_params(kp, d_model, d_k, d_v)

    queries = jax.random.normal(kq, (b_s, nq, d_model), jnp.float32)
    keys = jax.random.normal(kk, (b_s, nk, d_model), jnp.float32)
    values = jax.random.normal(kv, (b_s, nk, d_model), jnp.float32)

    out = scaled_dot_product_attention(queries, keys, values, params)
    out = jax.block_until_ready(out)

    ref = reference(queries, keys, values, params, d_k)
    # Tolerance reflects bf16 MXU operands (f32 accumulation) + approx reciprocal.
    np.testing.assert_allclose(np.asarray(out), np.asarray(ref),
                               rtol=2e-2, atol=2e-2)
    print("KERNEL_OK")
</pallas_src>

<mosaic_0001>
module attributes {stable_mosaic.version = 11 : i64} {
  func.func @sdpa_kernel(%arg0: i32, %arg1: memref<16x32xf32, #tpu.memory_space<vmem>>, %arg2: memref<16x32xf32, #tpu.memory_space<vmem>>, %arg3: memref<16x32xf32, #tpu.memory_space<vmem>>, %arg4: memref<32x32xbf16, #tpu.memory_space<vmem>>, %arg5: memref<1x32xf32, #tpu.memory_space<vmem>>, %arg6: memref<32x32xbf16, #tpu.memory_space<vmem>>, %arg7: memref<1x32xf32, #tpu.memory_space<vmem>>, %arg8: memref<32x32xbf16, #tpu.memory_space<vmem>>, %arg9: memref<1x32xf32, #tpu.memory_space<vmem>>, %arg10: memref<32x32xbf16, #tpu.memory_space<vmem>>, %arg11: memref<1x32xf32, #tpu.memory_space<vmem>>, %arg12: memref<16x32xf32, #tpu.memory_space<vmem>>) attributes {dimension_semantics = [#tpu.dimension_semantics<parallel>], iteration_bounds = array<i64: 1>, scalar_prefetch = 0 : i64, scratch_operands = 0 : i64, tpu.core_type = #tpu.core_type<tc>, window_params = [{transform_indices = @transform_0, window_bounds = array<i64: 16, 32>}, {transform_indices = @transform_1, window_bounds = array<i64: 16, 32>}, {transform_indices = @transform_2, window_bounds = array<i64: 16, 32>}, {pipeline_mode = #tpu.pipeline_mode<synchronous>, transform_indices = @transform_3, window_bounds = array<i64: 32, 32>}, {pipeline_mode = #tpu.pipeline_mode<synchronous>, transform_indices = @transform_4, window_bounds = array<i64: 1, 32>}, {pipeline_mode = #tpu.pipeline_mode<synchronous>, transform_indices = @transform_5, window_bounds = array<i64: 32, 32>}, {pipeline_mode = #tpu.pipeline_mode<synchronous>, transform_indices = @transform_6, window_bounds = array<i64: 1, 32>}, {pipeline_mode = #tpu.pipeline_mode<synchronous>, transform_indices = @transform_7, window_bounds = array<i64: 32, 32>}, {pipeline_mode = #tpu.pipeline_mode<synchronous>, transform_indices = @transform_8, window_bounds = array<i64: 1, 32>}, {pipeline_mode = #tpu.pipeline_mode<synchronous>, transform_indices = @transform_9, window_bounds = array<i64: 32, 32>}, {pipeline_mode = #tpu.pipeline_mode<synchronous>, transform_indices = @transform_10, window_bounds = array<i64: 1, 32>}, {transform_indices = @transform_11, window_bounds = array<i64: 16, 32>}]} {
    %c0 = arith.constant 0 : index
    %c0_0 = arith.constant 0 : index
    %0 = vector.load %arg1[%c0, %c0_0] : memref<16x32xf32, #tpu.memory_space<vmem>>, vector<16x32xf32>
    %1 = arith.truncf %0 : vector<16x32xf32> to vector<16x32xbf16>
    %c0_1 = arith.constant 0 : index
    %c0_2 = arith.constant 0 : index
    %2 = vector.load %arg4[%c0_1, %c0_2] : memref<32x32xbf16, #tpu.memory_space<vmem>>, vector<32x32xbf16>
    %cst = arith.constant dense<0.000000e+00> : vector<16x32xf32>
    %3 = tpu.matmul %1, %2, %cst {dimension_numbers = #tpu.dot_dimension_numbers<[1], [0], [0], [1], [0, 0, 1, 1], [], []>} : vector<16x32xbf16>, vector<32x32xbf16>, vector<16x32xf32> -> vector<16x32xf32>
    %c0_3 = arith.constant 0 : index
    %c0_4 = arith.constant 0 : index
    %4 = vector.load %arg5[%c0_3, %c0_4] : memref<1x32xf32, #tpu.memory_space<vmem>>, vector<1x32xf32>
    %5 = vector.broadcast %4 : vector<1x32xf32> to vector<16x32xf32>
    %6 = arith.addf %3, %5 : vector<16x32xf32>
    %c0_5 = arith.constant 0 : index
    %c0_6 = arith.constant 0 : index
    %7 = vector.load %arg2[%c0_5, %c0_6] : memref<16x32xf32, #tpu.memory_space<vmem>>, vector<16x32xf32>
    %8 = arith.truncf %7 : vector<16x32xf32> to vector<16x32xbf16>
    %c0_7 = arith.constant 0 : index
    %c0_8 = arith.constant 0 : index
    %9 = vector.load %arg6[%c0_7, %c0_8] : memref<32x32xbf16, #tpu.memory_space<vmem>>, vector<32x32xbf16>
    %cst_9 = arith.constant dense<0.000000e+00> : vector<16x32xf32>
    %10 = tpu.matmul %8, %9, %cst_9 {dimension_numbers = #tpu.dot_dimension_numbers<[1], [0], [0], [1], [0, 0, 1, 1], [], []>} : vector<16x32xbf16>, vector<32x32xbf16>, vector<16x32xf32> -> vector<16x32xf32>
    %c0_10 = arith.constant 0 : index
    %c0_11 = arith.constant 0 : index
    %11 = vector.load %arg7[%c0_10, %c0_11] : memref<1x32xf32, #tpu.memory_space<vmem>>, vector<1x32xf32>
    %12 = vector.broadcast %11 : vector<1x32xf32> to vector<16x32xf32>
    %13 = arith.addf %10, %12 : vector<16x32xf32>
    %c0_12 = arith.constant 0 : index
    %c0_13 = arith.constant 0 : index
    %14 = vector.load %arg3[%c0_12, %c0_13] : memref<16x32xf32, #tpu.memory_space<vmem>>, vector<16x32xf32>
    %15 = arith.truncf %14 : vector<16x32xf32> to vector<16x32xbf16>
    %c0_14 = arith.constant 0 : index
    %c0_15 = arith.constant 0 : index
    %16 = vector.load %arg8[%c0_14, %c0_15] : memref<32x32xbf16, #tpu.memory_space<vmem>>, vector<32x32xbf16>
    %cst_16 = arith.constant dense<0.000000e+00> : vector<16x32xf32>
    %17 = tpu.matmul %15, %16, %cst_16 {dimension_numbers = #tpu.dot_dimension_numbers<[1], [0], [0], [1], [0, 0, 1, 1], [], []>} : vector<16x32xbf16>, vector<32x32xbf16>, vector<16x32xf32> -> vector<16x32xf32>
    %c0_17 = arith.constant 0 : index
    %c0_18 = arith.constant 0 : index
    %18 = vector.load %arg9[%c0_17, %c0_18] : memref<1x32xf32, #tpu.memory_space<vmem>>, vector<1x32xf32>
    %19 = vector.broadcast %18 : vector<1x32xf32> to vector<16x32xf32>
    %20 = arith.addf %17, %19 : vector<16x32xf32>
    %21 = vector.shape_cast %6 : vector<16x32xf32> to vector<2x8x32xf32>
    %22 = vector.shape_cast %13 : vector<16x32xf32> to vector<2x8x32xf32>
    %23 = vector.shape_cast %20 : vector<16x32xf32> to vector<2x8x32xf32>
    %24 = arith.truncf %21 : vector<2x8x32xf32> to vector<2x8x32xbf16>
    %25 = arith.truncf %22 : vector<2x8x32xf32> to vector<2x8x32xbf16>
    "tpu.trace_start"() <{level = 10 : i32, message = "bqd,bkd->bqk"}> : () -> ()
    %cst_19 = arith.constant dense<0.000000e+00> : vector<2x8x8xf32>
    %26 = tpu.matmul %24, %25, %cst_19 {dimension_numbers = #tpu.dot_dimension_numbers<[2], [2], [1], [1], [0, 0, 0, 1, 1, 1], [0], [0]>} : vector<2x8x32xbf16>, vector<2x8x32xbf16>, vector<2x8x8xf32> -> vector<2x8x8xf32>
    "tpu.trace_stop"() : () -> ()
    %cst_20 = arith.constant dense<0xFF800000> : vector<2x8xf32>
    %27 = vector.multi_reduction <maximumf>, %26, %cst_20 [2] : vector<2x8x8xf32> to vector<2x8xf32>
    %28 = vector.shape_cast %27 : vector<2x8xf32> to vector<2x8x1xf32>
    %29 = vector.broadcast %28 : vector<2x8x1xf32> to vector<2x8x8xf32>
    %30 = arith.subf %26, %29 : vector<2x8x8xf32>
    %31 = math.exp %30 : vector<2x8x8xf32>
    %cst_21 = arith.constant dense<0.000000e+00> : vector<2x8xf32>
    %32 = vector.multi_reduction <add>, %31, %cst_21 [2] : vector<2x8x8xf32> to vector<2x8xf32>
    %33 = vector.shape_cast %32 : vector<2x8xf32> to vector<2x8x1xf32>
    %34 = tpu.reciprocal %33 {approx = true} : vector<2x8x1xf32> -> vector<2x8x1xf32>
    %35 = vector.broadcast %34 : vector<2x8x1xf32> to vector<2x8x8xf32>
    %36 = arith.mulf %31, %35 : vector<2x8x8xf32>
    %37 = arith.truncf %36 : vector<2x8x8xf32> to vector<2x8x8xbf16>
    %38 = arith.truncf %23 : vector<2x8x32xf32> to vector<2x8x32xbf16>
    "tpu.trace_start"() <{level = 10 : i32, message = "bqk,bkd->bqd"}> : () -> ()
    %cst_22 = arith.constant dense<0.000000e+00> : vector<2x8x32xf32>
    %39 = tpu.matmul %37, %38, %cst_22 {dimension_numbers = #tpu.dot_dimension_numbers<[2], [1], [1], [2], [0, 0, 0, 1, 1, 2], [0], [0]>} : vector<2x8x8xbf16>, vector<2x8x32xbf16>, vector<2x8x32xf32> -> vector<2x8x32xf32>
    "tpu.trace_stop"() : () -> ()
    %40 = vector.shape_cast %39 : vector<2x8x32xf32> to vector<16x32xf32>
    %41 = arith.truncf %40 : vector<16x32xf32> to vector<16x32xbf16>
    %c0_23 = arith.constant 0 : index
    %c0_24 = arith.constant 0 : index
    %42 = vector.load %arg10[%c0_23, %c0_24] : memref<32x32xbf16, #tpu.memory_space<vmem>>, vector<32x32xbf16>
    %cst_25 = arith.constant dense<0.000000e+00> : vector<16x32xf32>
    %43 = tpu.matmul %41, %42, %cst_25 {dimension_numbers = #tpu.dot_dimension_numbers<[1], [0], [0], [1], [0, 0, 1, 1], [], []>} : vector<16x32xbf16>, vector<32x32xbf16>, vector<16x32xf32> -> vector<16x32xf32>
    %c0_26 = arith.constant 0 : index
    %c0_27 = arith.constant 0 : index
    %44 = vector.load %arg11[%c0_26, %c0_27] : memref<1x32xf32, #tpu.memory_space<vmem>>, vector<1x32xf32>
    %45 = vector.broadcast %44 : vector<1x32xf32> to vector<16x32xf32>
    %46 = arith.addf %43, %45 : vector<16x32xf32>
    %c0_28 = arith.constant 0 : index
    %c0_29 = arith.constant 0 : index
    %47 = vector.load %arg12[%c0_28, %c0_29] : memref<16x32xf32, #tpu.memory_space<vmem>>, vector<16x32xf32>
    tpu.vector_store %arg12[%c0_28, %c0_29], %46 {strides = array<i32>} : memref<16x32xf32, #tpu.memory_space<vmem>>, vector<16x32xf32>,
    return
  }
  func.func @transform_0(%arg0: i32) -> (i32, i32) {
    %c0_i32 = arith.constant 0 : i32
    %c0_i32_0 = arith.constant 0 : i32
    return %arg0, %c0_i32 : i32, i32
  }
  func.func @transform_1(%arg0: i32) -> (i32, i32) {
    %c0_i32 = arith.constant 0 : i32
    %c0_i32_0 = arith.constant 0 : i32
    return %arg0, %c0_i32 : i32, i32
  }
  func.func @transform_2(%arg0: i32) -> (i32, i32) {
    %c0_i32 = arith.constant 0 : i32
    %c0_i32_0 = arith.constant 0 : i32
    return %arg0, %c0_i32 : i32, i32
  }
  func.func @transform_3(%arg0: i32) -> (i32, i32) {
    %c0_i32 = arith.constant 0 : i32
    %c0_i32_0 = arith.constant 0 : i32
    %c0_i32_1 = arith.constant 0 : i32
    return %c0_i32, %c0_i32_0 : i32, i32
  }
  func.func @transform_4(%arg0: i32) -> (i32, i32) {
    %c0_i32 = arith.constant 0 : i32
    %c0_i32_0 = arith.constant 0 : i32
    %c0_i32_1 = arith.constant 0 : i32
    return %c0_i32, %c0_i32_0 : i32, i32
  }
  func.func @transform_5(%arg0: i32) -> (i32, i32) {
    %c0_i32 = arith.constant 0 : i32
    %c0_i32_0 = arith.constant 0 : i32
    %c0_i32_1 = arith.constant 0 : i32
    return %c0_i32, %c0_i32_0 : i32, i32
  }
  func.func @transform_6(%arg0: i32) -> (i32, i32) {
    %c0_i32 = arith.constant 0 : i32
    %c0_i32_0 = arith.constant 0 : i32
    %c0_i32_1 = arith.constant 0 : i32
    return %c0_i32, %c0_i32_0 : i32, i32
  }
  func.func @transform_7(%arg0: i32) -> (i32, i32) {
    %c0_i32 = arith.constant 0 : i32
    %c0_i32_0 = arith.constant 0 : i32
    %c0_i32_1 = arith.constant 0 : i32
    return %c0_i32, %c0_i32_0 : i32, i32
  }
  func.func @transform_8(%arg0: i32) -> (i32, i32) {
    %c0_i32 = arith.constant 0 : i32
    %c0_i32_0 = arith.constant 0 : i32
    %c0_i32_1 = arith.constant 0 : i32
    return %c0_i32, %c0_i32_0 : i32, i32
  }
  func.func @transform_9(%arg0: i32) -> (i32, i32) {
    %c0_i32 = arith.constant 0 : i32
    %c0_i32_0 = arith.constant 0 : i32
    %c0_i32_1 = arith.constant 0 : i32
    return %c0_i32, %c0_i32_0 : i32, i32
  }
  func.func @transform_10(%arg0: i32) -> (i32, i32) {
    %c0_i32 = arith.constant 0 : i32
    %c0_i32_0 = arith.constant 0 : i32
    %c0_i32_1 = arith.constant 0 : i32
    return %c0_i32, %c0_i32_0 : i32, i32
  }
  func.func @transform_11(%arg0: i32) -> (i32, i32) {
    %c0_i32 = arith.constant 0 : i32
    %c0_i32_0 = arith.constant 0 : i32
    return %arg0, %c0_i32 : i32, i32
  }
}

</mosaic_0001>

<llo_original>
// kernel: tpu_custom_call.1
$region0: #{tpu_custom_call.1}
  #allocation0 [shape = 'u32[]', space=smem, size = 0x4, offset = 0x4, fixed_abs, tag = 'smem constant byte address 0x4 - core index']
  #allocation1 [shape = 'u32[144,128]{1,0:T(1,128)}', space=vmem, size = 0x12000, scoped, tag = 'internal scratch']
  %s0 = inlined_call_operand.hbm [shape: f32[16,32], index: 0, kind: input, shape index: {}]
  %s1 = inlined_call_operand.hbm [shape: f32[16,32], index: 1, kind: input, shape index: {}]
  %s2 = inlined_call_operand.hbm [shape: f32[16,32], index: 2, kind: input, shape index: {}]
  %s3 = inlined_call_operand.hbm [shape: bf16[32,32], index: 3, kind: input, shape index: {}]
  %s4 = inlined_call_operand.hbm [shape: f32[1,32], index: 4, kind: input, shape index: {}]
  %s5 = inlined_call_operand.hbm [shape: bf16[32,32], index: 5, kind: input, shape index: {}]
  %s6 = inlined_call_operand.hbm [shape: f32[1,32], index: 6, kind: input, shape index: {}]
  %s7 = inlined_call_operand.hbm [shape: bf16[32,32], index: 7, kind: input, shape index: {}]
  %s8 = inlined_call_operand.hbm [shape: f32[1,32], index: 8, kind: input, shape index: {}]
  %s9 = inlined_call_operand.vmem [shape: bf16[32,32], index: 9, kind: input, shape index: {}]
  %s10 = inlined_call_operand.vmem [shape: f32[1,32], index: 10, kind: input, shape index: {}]
  %s11 = inlined_call_operand.hbm [shape: f32[16,32], index: 11, kind: output, shape index: {}]
  %s12 = sld [smem:[#allocation0]]
  $region90: #{tpu_custom_call.1} parent=0
    _
  %s14 = ssub.s32 1, %s12
  %s15 = scalar_select 0, %s14, %s12
  $region1: #{tpu_custom_call.1} parent=0
    #allocation2 [shape = 'u8[8192]{0}', space=vmem, size = 0x2000, scoped, tag = 'input window, operand 0, single buffered']
    #allocation3 [shape = 's32[1]{0}', space=sflag, size = 0x4, scoped, tag = 'scoped memory for tpu_custom_call.1']
    #allocation4 [shape = 's32[1]{0}', space=sflag, size = 0x4, scoped, tag = 'scoped memory for tpu_custom_call.1']
    #allocation5 [shape = 'u8[8192]{0}', space=vmem, size = 0x2000, scoped, tag = 'input window, operand 1, single buffered']
    #allocation6 [shape = 's32[1]{0}', space=sflag, size = 0x4, scoped, tag = 'scoped memory for tpu_custom_call.1']
    #allocation7 [shape = 'u8[8192]{0}', space=vmem, size = 0x2000, scoped, tag = 'input window, operand 2, single buffered']
    #allocation8 [shape = 'u8[8192]{0}', space=vmem, size = 0x2000, scoped, tag = 'input window, operand 3, single buffered']
    #allocation9 [shape = 's32[1]{0}', space=sflag, size = 0x4, scoped, tag = 'scoped memory for tpu_custom_call.1']
    #allocation10 [shape = 'u8[512]{0}', space=vmem, size = 0x400, scoped, tag = 'input window, operand 4, single buffered']
    #allocation11 [shape = 'u8[8192]{0}', space=vmem, size = 0x2000, scoped, tag = 'input window, operand 5, single buffered']
    #allocation12 [shape = 's32[1]{0}', space=sflag, size = 0x4, scoped, tag = 'scoped memory for tpu_custom_call.1']
    #allocation13 [shape = 'u8[512]{0}', space=vmem, size = 0x400, scoped, tag = 'input window, operand 6, single buffered']
    #allocation14 [shape = 'u8[8192]{0}', space=vmem, size = 0x2000, scoped, tag = 'input window, operand 7, single buffered']
    #allocation15 [shape = 's32[1]{0}', space=sflag, size = 0x4, scoped, tag = 'scoped memory for tpu_custom_call.1']
    #allocation16 [shape = 'u8[512]{0}', space=vmem, size = 0x400, scoped, tag = 'input window, operand 8, single buffered']
    #allocation17 [shape = 'u8[8192]{0}', space=vmem, size = 0x2000, scoped, tag = 'output window, operand 0, single buffered']
    %16 = vsyncpa [#allocation3], 0
    %17 = vsyncpa [#allocation6], 0
    %18 = vsyncpa [#allocation9], 0
    %19 = vsyncpa [#allocation12], 0
    %20 = vsyncpa [#allocation15], 0
    %21 = vsyncpa [#allocation4], 0
    // Predicated region
    $region2: #{tpu_custom_call.1} parent=1 // pred_check
      _
    $region3: #{tpu_custom_call.1} parent=1 // pred_check_branch
      %23 = sbr.rel (0) target = $region5
    $region4: #{tpu_custom_call.1} parent=1 // pred_region
      %s25 = ssub.s32 256, 256
      %26 = vsyncadd [#allocation3], %s25
      %s27 = sshll.u32 [#allocation2], 4
      %s28 = int_to_ptr.vmem [resolvable:$true] %s27
      %33 = dma.hbm_to_vmem [thread:$0]  %s0, 256, %s28, [#allocation3], 128, 128, 8
    $region5: #{tpu_custom_call.1} parent=1 // pred_fallthru
      _
    // Predicated region
    $region6: #{tpu_custom_call.1} parent=1 // pred_check
      _
    $region7: #{tpu_custom_call.1} parent=1 // pred_check_branch
      %35 = sbr.rel (0) target = $region9
    $region8: #{tpu_custom_call.1} parent=1 // pred_region
      %s37 = ssub.s32 256, 256
      %38 = vsyncadd [#allocation6], %s37
      %s39 = sshll.u32 [#allocation5], 4
      %s40 = int_to_ptr.vmem [resolvable:$true] %s39
      %45 = dma.hbm_to_vmem [thread:$0]  %s1, 256, %s40, [#allocation6], 128, 128, 8
    $region9: #{tpu_custom_call.1} parent=1 // pred_fallthru
      _
    // Predicated region
    $region10: #{tpu_custom_call.1} parent=1 // pred_check
      _
    $region11: #{tpu_custom_call.1} parent=1 // pred_check_branch
      %47 = sbr.rel (0) target = $region13
    $region12: #{tpu_custom_call.1} parent=1 // pred_region
      %s49 = ssub.s32 256, 256
      %50 = vsyncadd [#allocation6], %s49
      %s51 = sshll.u32 [#allocation7], 4
      %s52 = int_to_ptr.vmem [resolvable:$true] %s51
      %57 = dma.hbm_to_vmem [thread:$0]  %s2, 256, %s52, [#allocation6], 128, 128, 8
    $region13: #{tpu_custom_call.1} parent=1 // pred_fallthru
      _
    // Predicated region
    $region14: #{tpu_custom_call.1} parent=1 // pred_check
      _
    $region15: #{tpu_custom_call.1} parent=1 // pred_check_branch
      %59 = sbr.rel (0) target = $region17
    $region16: #{tpu_custom_call.1} parent=1 // pred_region
      %s61 = ssub.s32 256, 256
      %62 = vsyncadd [#allocation9], %s61
      %s63 = sshll.u32 [#allocation8], 4
      %s64 = int_to_ptr.vmem [resolvable:$true] %s63
      %69 = dma.hbm_to_vmem [thread:$0]  %s3, 256, %s64, [#allocation9], 64, 64, 4
    $region17: #{tpu_custom_call.1} parent=1 // pred_fallthru
      _
    // Predicated region
    $region18: #{tpu_custom_call.1} parent=1 // pred_check
      _
    $region19: #{tpu_custom_call.1} parent=1 // pred_check_branch
      %71 = sbr.rel (0) target = $region21
    $region20: #{tpu_custom_call.1} parent=1 // pred_region
      %s73 = ssub.s32 16, 16
      %74 = vsyncadd [#allocation9], %s73
      %s76 = sshll.u32 [#allocation10], 4
      %s77 = int_to_ptr.vmem [resolvable:$true] %s76
      %79 = dma.hbm_to_vmem [thread:$0]  %s4, 16, %s77, [#allocation9]
    $region21: #{tpu_custom_call.1} parent=1 // pred_fallthru
      _
    // Predicated region
    $region22: #{tpu_custom_call.1} parent=1 // pred_check
      _
    $region23: #{tpu_custom_call.1} parent=1 // pred_check_branch
      %81 = sbr.rel (0) target = $region25
    $region24: #{tpu_custom_call.1} parent=1 // pred_region
      %s83 = ssub.s32 256, 256
      %84 = vsyncadd [#allocation12], %s83
      %s85 = sshll.u32 [#allocation11], 4
      %s86 = int_to_ptr.vmem [resolvable:$true] %s85
      %91 = dma.hbm_to_vmem [thread:$0]  %s5, 256, %s86, [#allocation12], 64, 64, 4
    $region25: #{tpu_custom_call.1} parent=1 // pred_fallthru
      _
    // Predicated region
    $region26: #{tpu_custom_call.1} parent=1 // pred_check
      _
    $region27: #{tpu_custom_call.1} parent=1 // pred_check_branch
      %93 = sbr.rel (0) target = $region29
    $region28: #{tpu_custom_call.1} parent=1 // pred_region
      %s95 = ssub.s32 16, 16
      %96 = vsyncadd [#allocation12], %s95
      %s98 = sshll.u32 [#allocation13], 4
      %s99 = int_to_ptr.vmem [resolvable:$true] %s98
      %101 = dma.hbm_to_vmem [thread:$0]  %s6, 16, %s99, [#allocation12]
    $region29: #{tpu_custom_call.1} parent=1 // pred_fallthru
      _
    // Predicated region
    $region30: #{tpu_custom_call.1} parent=1 // pred_check
      _
    $region31: #{tpu_custom_call.1} parent=1 // pred_check_branch
      %103 = sbr.rel (0) target = $region33
    $region32: #{tpu_custom_call.1} parent=1 // pred_region
      %s105 = ssub.s32 256, 256
      %106 = vsyncadd [#allocation15], %s105
      %s107 = sshll.u32 [#allocation14], 4
      %s108 = int_to_ptr.vmem [resolvable:$true] %s107
      %113 = dma.hbm_to_vmem [thread:$0]  %s7, 256, %s108, [#allocation15], 64, 64, 4
    $region33: #{tpu_custom_call.1} parent=1 // pred_fallthru
      _
    // Predicated region
    $region34: #{tpu_custom_call.1} parent=1 // pred_check
      _
    $region35: #{tpu_custom_call.1} parent=1 // pred_check_branch
      %115 = sbr.rel (0) target = $region37
    $region36: #{tpu_custom_call.1} parent=1 // pred_region
      %s117 = ssub.s32 16, 16
      %118 = vsyncadd [#allocation15], %s117
      %s120 = sshll.u32 [#allocation16], 4
      %s121 = int_to_ptr.vmem [resolvable:$true] %s120
      %123 = dma.hbm_to_vmem [thread:$0]  %s8, 16, %s121, [#allocation15]
    $region37: #{tpu_custom_call.1} parent=1 // pred_fallthru
      _
    // Predicated region
    $region38: #{tpu_custom_call.1} parent=1 // pred_check
      _
    $region39: #{tpu_custom_call.1} parent=1 // pred_check_branch
      %125 = sbr.rel (0) target = $region41
    $region40: #{tpu_custom_call.1} parent=1 // pred_region
      _
    $region41: #{tpu_custom_call.1} parent=1 // pred_fallthru
      _
    // Predicated region
    $region42: #{tpu_custom_call.1} parent=1 // pred_check
      _
    $region43: #{tpu_custom_call.1} parent=1 // pred_check_branch
      %127 = sbr.rel (0) target = $region45
    $region44: #{tpu_custom_call.1} parent=1 // pred_region
      _
    $region45: #{tpu_custom_call.1} parent=1 // pred_fallthru
      _
    // Predicated region
    $region46: #{tpu_custom_call.1} parent=1 // pred_check
      _
    $region47: #{tpu_custom_call.1} parent=1 // pred_check_branch
      %129 = sbr.rel (0) target = $region49
    $region48: #{tpu_custom_call.1} parent=1 // pred_region
      %130 = dma.done [#allocation3], 256
    $region49: #{tpu_custom_call.1} parent=1 // pred_fallthru
      _
    // Predicated region
    $region50: #{tpu_custom_call.1} parent=1 // pred_check
      _
    $region51: #{tpu_custom_call.1} parent=1 // pred_check_branch
      %132 = sbr.rel (0) target = $region53
    $region52: #{tpu_custom_call.1} parent=1 // pred_region
      %133 = dma.done [#allocation6], 256
    $region53: #{tpu_custom_call.1} parent=1 // pred_fallthru
      _
    // Predicated region
    $region54: #{tpu_custom_call.1} parent=1 // pred_check
      _
    $region55: #{tpu_custom_call.1} parent=1 // pred_check_branch
      %135 = sbr.rel (0) target = $region57
    $region56: #{tpu_custom_call.1} parent=1 // pred_region
      %136 = dma.done [#allocation6], 256
    $region57: #{tpu_custom_call.1} parent=1 // pred_fallthru
      _
    // Predicated region
    $region58: #{tpu_custom_call.1} parent=1 // pred_check
      _
    $region59: #{tpu_custom_call.1} parent=1 // pred_check_branch
      %138 = sbr.rel (0) target = $region61
    $region60: #{tpu_custom_call.1} parent=1 // pred_region
      %139 = dma.done [#allocation9], 256
    $region61: #{tpu_custom_call.1} parent=1 // pred_fallthru
      _
    // Predicated region
    $region62: #{tpu_custom_call.1} parent=1 // pred_check
      _
    $region63: #{tpu_custom_call.1} parent=1 // pred_check_branch
      %141 = sbr.rel (0) target = $region65
    $region64: #{tpu_custom_call.1} parent=1 // pred_region
      %142 = dma.done [#allocation9], 16
    $region65: #{tpu_custom_call.1} parent=1 // pred_fallthru
      _
    // Predicated region
    $region66: #{tpu_custom_call.1} parent=1 // pred_check
      _
    $region67: #{tpu_custom_call.1} parent=1 // pred_check_branch
      %144 = sbr.rel (0) target = $region69
    $region68: #{tpu_custom_call.1} parent=1 // pred_region
      %145 = dma.done [#allocation12], 256
    $region69: #{tpu_custom_call.1} parent=1 // pred_fallthru
      _
    // Predicated region
    $region70: #{tpu_custom_call.1} parent=1 // pred_check
      _
    $region71: #{tpu_custom_call.1} parent=1 // pred_check_branch
      %147 = sbr.rel (0) target = $region73
    $region72: #{tpu_custom_call.1} parent=1 // pred_region
      %148 = dma.done [#allocation12], 16
    $region73: #{tpu_custom_call.1} parent=1 // pred_fallthru
      _
    // Predicated region
    $region74: #{tpu_custom_call.1} parent=1 // pred_check
      _
    $region75: #{tpu_custom_call.1} parent=1 // pred_check_branch
      %150 = sbr.rel (0) target = $region77
    $region76: #{tpu_custom_call.1} parent=1 // pred_region
      %151 = dma.done [#allocation15], 256
    $region77: #{tpu_custom_call.1} parent=1 // pred_fallthru
      _
    // Predicated region
    $region78: #{tpu_custom_call.1} parent=1 // pred_check
      _
    $region79: #{tpu_custom_call.1} parent=1 // pred_check_branch
      %153 = sbr.rel (0) target = $region81
    $region80: #{tpu_custom_call.1} parent=1 // pred_region
      %154 = dma.done [#allocation15], 16
    $region81: #{tpu_custom_call.1} parent=1 // pred_fallthru
      _
    %v156 = vld [vmem:[#allocation2] sm:$0xff]
    %v157 = vld [vmem:[#allocation2 + $0x8] sm:$0xff]
    %v158 = vpack.c.bf16 %v157, %v156
    %v159 = vld [vmem:[#allocation8] sm:$0xf]
    %v160 = vld [vmem:[#allocation8 + $0x4] sm:$0xf]
    %v161 = vld [vmem:[#allocation8 + $0x8] sm:$0xf]
    %v162 = vld [vmem:[#allocation8 + $0xc] sm:$0xf]
    %v163 = vld [vmem:[#allocation10] sm:$0x1]
    %v165 = vlaneseq
    %v166 = vshrl.u32 %v165, 7
    %v167 = vsub.s32 0, %v166
    %v168 = vrot.slane %v163, %v167
    %v174 = vunpack.c.l.b16 %v159
    %v175 = vunpack.c.l.b16 %v160
    %v176 = vunpack.c.l.b16 %v161
    %v177 = vunpack.c.l.b16 %v162
    %v178 = vpack.c.b16 %v175, %v174
    %v179 = vpack.c.b16 %v177, %v176
    %vm182 = vcmask 261120
    %v184 = vsel %vm182, %v158, 0
    %186 = vmatprep.subr.bf16.mxu0 0
    %187 = vmatpush1.bf16.msra.mxu0 0
    %188 = vmatprep.subr.bf16.mxu0 0
    %189 = vmatpush1.bf16.msra.mxu0 0
    %190 = vmatprep.subr.bf16.mxu0 0
    %191 = vmatpush1.bf16.msra.mxu0 0
    %192 = vmatprep.subr.bf16.mxu0 0
    %193 = vmatpush1.bf16.msra.mxu0 0
    %194 = vmatprep.subr.bf16.mxu0 0
    %195 = vmatpush1.bf16.msra.mxu0 0
    %196 = vmatprep.subr.bf16.mxu0 0
    %197 = vmatpush1.bf16.msra.mxu0 0
    %198 = vmatprep.subr.bf16.mxu0 0
    %199 = vmatpush1.bf16.msra.mxu0 %v179
    %200 = vmatprep.subr.bf16.mxu0 0
    %201 = vmatpush1.bf16.msra.mxu0 %v178
    %202 = vmatprep.subr.bf16.mxu0 0
    %203 = vmatpush2.bf16.msra.mxu0 0
    %204 = vmatprep.subr.bf16.mxu0 0
    %205 = vmatpush2.bf16.msra.mxu0 0
    %206 = vmatprep.subr.bf16.mxu0 0
    %207 = vmatpush2.bf16.msra.mxu0 0
    %208 = vmatprep.subr.bf16.mxu0 0
    %209 = vmatpush2.bf16.msra.mxu0 0
    %210 = vmatprep.subr.bf16.mxu0 0
    %211 = vmatpush2.bf16.msra.mxu0 0
    %212 = vmatprep.subr.bf16.mxu0 0
    %213 = vmatpush2.bf16.msra.mxu0 0
    %214 = vmatprep.subr.bf16.mxu0 0
    %215 = vmatpush2.bf16.msra.mxu0 0
    %216 = vmatprep.subr.bf16.mxu0 0
    %217 = vmatpush2.bf16.msra.mxu0 0
    %218 = vmatprep.mubr.bf16.mxu0 0
    %219 = vmatmul.mubr.bf16.gmra.mxu0 %v184
    %v220 = vpop.f32.mrf.mxu0
    %v221 = vadd.f32 %v168, %v220
    %v222 = vpop.f32.mrf.mxu0
    %v223 = vpop.f32.mrf.mxu0
    %v224 = vadd.f32 %v168, %v223
    %v225 = vpop.f32.mrf.mxu0
    %226 = vdwg.mxu0
    %v227 = vld [vmem:[#allocation5] sm:$0xff]
    %v228 = vld [vmem:[#allocation5 + $0x8] sm:$0xff]
    %v229 = vpack.c.bf16 %v228, %v227
    %v230 = vld [vmem:[#allocation11] sm:$0xf]
    %v231 = vld [vmem:[#allocation11 + $0x4] sm:$0xf]
    %v232 = vld [vmem:[#allocation11 + $0x8] sm:$0xf]
    %v233 = vld [vmem:[#allocation11 + $0xc] sm:$0xf]
    %v234 = vld [vmem:[#allocation13] sm:$0x1]
    %v236 = vlaneseq
    %v237 = vshrl.u32 %v236, 7
    %v238 = vsub.s32 0, %v237
    %v239 = vrot.slane %v234, %v238
    %v245 = vunpack.c.l.b16 %v230
    %v246 = vunpack.c.l.b16 %v231
    %v247 = vunpack.c.l.b16 %v232
    %v248 = vunpack.c.l.b16 %v233
    %v249 = vpack.c.b16 %v246, %v245
    %v250 = vpack.c.b16 %v248, %v247
    %v254 = vsel %vm182, %v229, 0
    %256 = vmatprep.subr.bf16.mxu0 0
    %257 = vmatpush1.bf16.msra.mxu0 0
    %258 = vmatprep.subr.bf16.mxu0 0
    %259 = vmatpush1.bf16.msra.mxu0 0
    %260 = vmatprep.subr.bf16.mxu0 0
    %261 = vmatpush1.bf16.msra.mxu0 0
    %262 = vmatprep.subr.bf16.mxu0 0
    %263 = vmatpush1.bf16.msra.mxu0 0
    %264 = vmatprep.subr.bf16.mxu0 0
    %265 = vmatpush1.bf16.msra.mxu0 0
    %266 = vmatprep.subr.bf16.mxu0 0
    %267 = vmatpush1.bf16.msra.mxu0 0
    %268 = vmatprep.subr.bf16.mxu0 0
    %269 = vmatpush1.bf16.msra.mxu0 %v250
    %270 = vmatprep.subr.bf16.mxu0 0
    %271 = vmatpush1.bf16.msra.mxu0 %v249
    %272 = vmatprep.subr.bf16.mxu0 0
    %273 = vmatpush2.bf16.msra.mxu0 0
    %274 = vmatprep.subr.bf16.mxu0 0
    %275 = vmatpush2.bf16.msra.mxu0 0
    %276 = vmatprep.subr.bf16.mxu0 0
    %277 = vmatpush2.bf16.msra.mxu0 0
    %278 = vmatprep.subr.bf16.mxu0 0
    %279 = vmatpush2.bf16.msra.mxu0 0
    %280 = vmatprep.subr.bf16.mxu0 0
    %281 = vmatpush2.bf16.msra.mxu0 0
    %282 = vmatprep.subr.bf16.mxu0 0
    %283 = vmatpush2.bf16.msra.mxu0 0
    %284 = vmatprep.subr.bf16.mxu0 0
    %285 = vmatpush2.bf16.msra.mxu0 0
    %286 = vmatprep.subr.bf16.mxu0 0
    %287 = vmatpush2.bf16.msra.mxu0 0
    %288 = vmatprep.mubr.bf16.mxu0 0
    %289 = vmatmul.mubr.bf16.gmra.mxu0 %v254
    %v290 = vpop.f32.mrf.mxu0
    %v291 = vadd.f32 %v239, %v290
    %v292 = vpop.f32.mrf.mxu0
    %v293 = vpop.f32.mrf.mxu0
    %v294 = vadd.f32 %v239, %v293
    %v295 = vpop.f32.mrf.mxu0
    %296 = vdwg.mxu0
    %v297 = vld [vmem:[#allocation7] sm:$0xff]
    %v298 = vld [vmem:[#allocation7 + $0x8] sm:$0xff]
    %v299 = vpack.c.bf16 %v298, %v297
    %v300 = vld [vmem:[#allocation14] sm:$0xf]
    %v301 = vld [vmem:[#allocation14 + $0x4] sm:$0xf]
    %v302 = vld [vmem:[#allocation14 + $0x8] sm:$0xf]
    %v303 = vld [vmem:[#allocation14 + $0xc] sm:$0xf]
    %v304 = vld [vmem:[#allocation16] sm:$0x1]
    %v306 = vlaneseq
    %v307 = vshrl.u32 %v306, 7
    %v308 = vsub.s32 0, %v307
    %v309 = vrot.slane %v304, %v308
    %v315 = vunpack.c.l.b16 %v300
    %v316 = vunpack.c.l.b16 %v301
    %v317 = vunpack.c.l.b16 %v302
    %v318 = vunpack.c.l.b16 %v303
    %v319 = vpack.c.b16 %v316, %v315
    %v320 = vpack.c.b16 %v318, %v317
    %v324 = vsel %vm182, %v299, 0
    %326 = vmatprep.subr.bf16.mxu0 0
    %327 = vmatpush1.bf16.msra.mxu0 0
    %328 = vmatprep.subr.bf16.mxu0 0
    %329 = vmatpush1.bf16.msra.mxu0 0
    %330 = vmatprep.subr.bf16.mxu0 0
    %331 = vmatpush1.bf16.msra.mxu0 0
    %332 = vmatprep.subr.bf16.mxu0 0
    %333 = vmatpush1.bf16.msra.mxu0 0
    %334 = vmatprep.subr.bf16.mxu0 0
    %335 = vmatpush1.bf16.msra.mxu0 0
    %336 = vmatprep.subr.bf16.mxu0 0
    %337 = vmatpush1.bf16.msra.mxu0 0
    %338 = vmatprep.subr.bf16.mxu0 0
    %339 = vmatpush1.bf16.msra.mxu0 %v320
    %340 = vmatprep.subr.bf16.mxu0 0
    %341 = vmatpush1.bf16.msra.mxu0 %v319
    %342 = vmatprep.subr.bf16.mxu0 0
    %343 = vmatpush2.bf16.msra.mxu0 0
    %344 = vmatprep.subr.bf16.mxu0 0
    %345 = vmatpush2.bf16.msra.mxu0 0
    %346 = vmatprep.subr.bf16.mxu0 0
    %347 = vmatpush2.bf16.msra.mxu0 0
    %348 = vmatprep.subr.bf16.mxu0 0
    %349 = vmatpush2.bf16.msra.mxu0 0
    %350 = vmatprep.subr.bf16.mxu0 0
    %351 = vmatpush2.bf16.msra.mxu0 0
    %352 = vmatprep.subr.bf16.mxu0 0
    %353 = vmatpush2.bf16.msra.mxu0 0
    %354 = vmatprep.subr.bf16.mxu0 0
    %355 = vmatpush2.bf16.msra.mxu0 0
    %356 = vmatprep.subr.bf16.mxu0 0
    %357 = vmatpush2.bf16.msra.mxu0 0
    %358 = vmatprep.mubr.bf16.mxu0 0
    %359 = vmatmul.mubr.bf16.gmra.mxu0 %v324
    %v360 = vpop.f32.mrf.mxu0
    %v361 = vadd.f32 %v309, %v360
    %v362 = vpop.f32.mrf.mxu0
    %v363 = vpop.f32.mrf.mxu0
    %v364 = vadd.f32 %v309, %v363
    %v365 = vpop.f32.mrf.mxu0
    %366 = vdwg.mxu0
    %v367 = vpack.c.bf16 %v221, %v221
    %v368 = vpack.c.bf16 %v224, %v224
    %v369 = vpack.c.bf16 %v291, %v291
    %v370 = vpack.c.bf16 %v294, %v294
    %v372 = vsel %vm182, %v367, 0
    %v375 = vsel %vm182, %v369, 0
    %377 = vmatprep.subr.bf16.mxu0 0
    %378 = vmatpush1.bf16.xpose.msra.mxu0 0
    %379 = vmatprep.subr.bf16.mxu0 0
    %380 = vmatpush1.bf16.xpose.msra.mxu0 0
    %381 = vmatprep.subr.bf16.mxu0 0
    %382 = vmatpush1.bf16.xpose.msra.mxu0 0
    %383 = vmatprep.subr.bf16.mxu0 0
    %384 = vmatpush1.bf16.xpose.msra.mxu0 0
    %385 = vmatprep.subr.bf16.mxu0 0
    %386 = vmatpush1.bf16.xpose.msra.mxu0 0
    %387 = vmatprep.subr.bf16.mxu0 0
    %388 = vmatpush1.bf16.xpose.msra.mxu0 0
    %389 = vmatprep.subr.bf16.mxu0 0
    %390 = vmatpush1.bf16.xpose.msra.mxu0 0
    %391 = vmatprep.subr.bf16.mxu0 0
    %392 = vmatpush1.bf16.xpose.msra.mxu0 %v375
    %393 = vmatprep.subr.bf16.mxu0 0
    %394 = vmatpush2.bf16.xpose.msra.mxu0 0
    %395 = vmatprep.subr.bf16.mxu0 0
    %396 = vmatpush2.bf16.xpose.msra.mxu0 0
    %397 = vmatprep.subr.bf16.mxu0 0
    %398 = vmatpush2.bf16.xpose.msra.mxu0 0
    %399 = vmatprep.subr.bf16.mxu0 0
    %400 = vmatpush2.bf16.xpose.msra.mxu0 0
    %401 = vmatprep.subr.bf16.mxu0 0
    %402 = vmatpush2.bf16.xpose.msra.mxu0 0
    %403 = vmatprep.subr.bf16.mxu0 0
    %404 = vmatpush2.bf16.xpose.msra.mxu0 0
    %405 = vmatprep.subr.bf16.mxu0 0
    %406 = vmatpush2.bf16.xpose.msra.mxu0 0
    %407 = vmatprep.subr.bf16.mxu0 0
    %408 = vmatpush2.bf16.xpose.msra.mxu0 0
    %409 = vmatprep.mubr.bf16.mxu0 0
    %410 = vmatmul.mubr.bf16.gmra.mxu0 %v372
    %v411 = vpop.f32.mrf.mxu0
    %v412 = vadd.f32 0.0, %v411
    %v413 = vpop.f32.mrf.mxu0
    %v414 = vpop.f32.mrf.mxu0
    %v415 = vpop.f32.mrf.mxu0
    %416 = vdwg.mxu0
    %v418 = vsel %vm182, %v368, 0
    %v421 = vsel %vm182, %v370, 0
    %423 = vmatprep.subr.bf16.mxu0 0
    %424 = vmatpush1.bf16.xpose.msra.mxu0 0
    %425 = vmatprep.subr.bf16.mxu0 0
    %426 = vmatpush1.bf16.xpose.msra.mxu0 0
    %427 = vmatprep.subr.bf16.mxu0 0
    %428 = vmatpush1.bf16.xpose.msra.mxu0 0
    %429 = vmatprep.subr.bf16.mxu0 0
    %430 = vmatpush1.bf16.xpose.msra.mxu0 0
    %431 = vmatprep.subr.bf16.mxu0 0
    %432 = vmatpush1.bf16.xpose.msra.mxu0 0
    %433 = vmatprep.subr.bf16.mxu0 0
    %434 = vmatpush1.bf16.xpose.msra.mxu0 0
    %435 = vmatprep.subr.bf16.mxu0 0
    %436 = vmatpush1.bf16.xpose.msra.mxu0 0
    %437 = vmatprep.subr.bf16.mxu0 0
    %438 = vmatpush1.bf16.xpose.msra.mxu0 %v421
    %439 = vmatprep.subr.bf16.mxu0 0
    %440 = vmatpush2.bf16.xpose.msra.mxu0 0
    %441 = vmatprep.subr.bf16.mxu0 0
    %442 = vmatpush2.bf16.xpose.msra.mxu0 0
    %443 = vmatprep.subr.bf16.mxu0 0
    %444 = vmatpush2.bf16.xpose.msra.mxu0 0
    %445 = vmatprep.subr.bf16.mxu0 0
    %446 = vmatpush2.bf16.xpose.msra.mxu0 0
    %447 = vmatprep.subr.bf16.mxu0 0
    %448 = vmatpush2.bf16.xpose.msra.mxu0 0
    %449 = vmatprep.subr.bf16.mxu0 0
    %450 = vmatpush2.bf16.xpose.msra.mxu0 0
    %451 = vmatprep.subr.bf16.mxu0 0
    %452 = vmatpush2.bf16.xpose.msra.mxu0 0
    %453 = vmatprep.subr.bf16.mxu0 0
    %454 = vmatpush2.bf16.xpose.msra.mxu0 0
    %455 = vmatprep.mubr.bf16.mxu0 0
    %456 = vmatmul.mubr.bf16.gmra.mxu0 %v418
    %v457 = vpop.f32.mrf.mxu0
    %v458 = vadd.f32 0.0, %v457
    %v459 = vpop.f32.mrf.mxu0
    %v460 = vpop.f32.mrf.mxu0
    %v461 = vpop.f32.mrf.mxu0
    %462 = vdwg.mxu0
    %vm463 = vcmask 64512
    %v464 = vsel %vm463, %v412, -inf
    %465 = vmax.xlane.f32.xlu0 %v464
    %v466 = vpop.xlane.xlu0 %465
    %v467 = vsel %vm463, %v458, -inf
    %468 = vmax.xlane.f32.xlu0 %v467
    %v469 = vpop.xlane.xlu0 %468
    %v470 = vsub.f32 %v412, %v466
    %v471 = vsub.f32 %v458, %v469
    %v472 = vmul.f32 %v470, 1.442695
    %v473 = vpow.pop %v472
    %v474 = vmul.f32 %v471, 1.442695
    %v475 = vpow.pop %v474
    %v476 = vsel %vm463, %v473, 0.0
    %477 = vadd.xlane.f32.xlu0 %v476
    %v478 = vpop.xlane.xlu0 %477
    %v479 = vsel %vm463, %v475, 0.0
    %480 = vadd.xlane.f32.xlu0 %v479
    %v481 = vpop.xlane.xlu0 %480
    %v482 = vrcp.pop %v478
    %v483 = vrcp.pop %v481
    %v484 = vmul.f32 %v473, %v482
    %v485 = vmul.f32 %v475, %v483
    %v486 = vpack.c.bf16 %v484, %v484
    %v487 = vpack.c.bf16 %v485, %v485
    %v488 = vpack.c.bf16 %v361, %v361
    %v489 = vpack.c.bf16 %v364, %v364
    %v491 = vsel %vm463, %v486, 0
    %vm493 = vcmask 1043456
    %v495 = vsel %vm493, %v488, 0
    %497 = vmatprep.subr.bf16.mxu0 0
    %498 = vmatpush1.bf16.msra.mxu0 0
    %499 = vmatprep.subr.bf16.mxu0 0
    %500 = vmatpush1.bf16.msra.mxu0 0
    %501 = vmatprep.subr.bf16.mxu0 0
    %502 = vmatpush1.bf16.msra.mxu0 0
    %503 = vmatprep.subr.bf16.mxu0 0
    %504 = vmatpush1.bf16.msra.mxu0 0
    %505 = vmatprep.subr.bf16.mxu0 0
    %506 = vmatpush1.bf16.msra.mxu0 0
    %507 = vmatprep.subr.bf16.mxu0 0
    %508 = vmatpush1.bf16.msra.mxu0 0
    %509 = vmatprep.subr.bf16.mxu0 0
    %510 = vmatpush1.bf16.msra.mxu0 0
    %511 = vmatprep.subr.bf16.mxu0 0
    %512 = vmatpush1.bf16.msra.mxu0 %v495
    %513 = vmatprep.subr.bf16.mxu0 0
    %514 = vmatpush2.bf16.msra.mxu0 0
    %515 = vmatprep.subr.bf16.mxu0 0
    %516 = vmatpush2.bf16.msra.mxu0 0
    %517 = vmatprep.subr.bf16.mxu0 0
    %518 = vmatpush2.bf16.msra.mxu0 0
    %519 = vmatprep.subr.bf16.mxu0 0
    %520 = vmatpush2.bf16.msra.mxu0 0
    %521 = vmatprep.subr.bf16.mxu0 0
    %522 = vmatpush2.bf16.msra.mxu0 0
    %523 = vmatprep.subr.bf16.mxu0 0
    %524 = vmatpush2.bf16.msra.mxu0 0
    %525 = vmatprep.subr.bf16.mxu0 0
    %526 = vmatpush2.bf16.msra.mxu0 0
    %527 = vmatprep.subr.bf16.mxu0 0
    %528 = vmatpush2.bf16.msra.mxu0 0
    %529 = vmatprep.mubr.bf16.mxu0 0
    %530 = vmatmul.mubr.bf16.gmra.mxu0 %v491
    %v531 = vpop.f32.mrf.mxu0
    %v532 = vadd.f32 0.0, %v531
    %v533 = vpop.f32.mrf.mxu0
    %v534 = vpop.f32.mrf.mxu0
    %v535 = vpop.f32.mrf.mxu0
    %536 = vdwg.mxu0
    %v538 = vsel %vm463, %v487, 0
    %v541 = vsel %vm493, %v489, 0
    %543 = vmatprep.subr.bf16.mxu0 0
    %544 = vmatpush1.bf16.msra.mxu0 0
    %545 = vmatprep.subr.bf16.mxu0 0
    %546 = vmatpush1.bf16.msra.mxu0 0
    %547 = vmatprep.subr.bf16.mxu0 0
    %548 = vmatpush1.bf16.msra.mxu0 0
    %549 = vmatprep.subr.bf16.mxu0 0
    %550 = vmatpush1.bf16.msra.mxu0 0
    %551 = vmatprep.subr.bf16.mxu0 0
    %552 = vmatpush1.bf16.msra.mxu0 0
    %553 = vmatprep.subr.bf16.mxu0 0
    %554 = vmatpush1.bf16.msra.mxu0 0
    %555 = vmatprep.subr.bf16.mxu0 0
    %556 = vmatpush1.bf16.msra.mxu0 0
    %557 = vmatprep.subr.bf16.mxu0 0
    %558 = vmatpush1.bf16.msra.mxu0 %v541
    %559 = vmatprep.subr.bf16.mxu0 0
    %560 = vmatpush2.bf16.msra.mxu0 0
    %561 = vmatprep.subr.bf16.mxu0 0
    %562 = vmatpush2.bf16.msra.mxu0 0
    %563 = vmatprep.subr.bf16.mxu0 0
    %564 = vmatpush2.bf16.msra.mxu0 0
    %565 = vmatprep.subr.bf16.mxu0 0
    %566 = vmatpush2.bf16.msra.mxu0 0
    %567 = vmatprep.subr.bf16.mxu0 0
    %568 = vmatpush2.bf16.msra.mxu0 0
    %569 = vmatprep.subr.bf16.mxu0 0
    %570 = vmatpush2.bf16.msra.mxu0 0
    %571 = vmatprep.subr.bf16.mxu0 0
    %572 = vmatpush2.bf16.msra.mxu0 0
    %573 = vmatprep.subr.bf16.mxu0 0
    %574 = vmatpush2.bf16.msra.mxu0 0
    %575 = vmatprep.mubr.bf16.mxu0 0
    %576 = vmatmul.mubr.bf16.gmra.mxu0 %v538
    %v577 = vpop.f32.mrf.mxu0
    %v578 = vadd.f32 0.0, %v577
    %v579 = vpop.f32.mrf.mxu0
    %v580 = vpop.f32.mrf.mxu0
    %v581 = vpop.f32.mrf.mxu0
    %582 = vdwg.mxu0
    %v583 = vpack.c.bf16 %v578, %v532
    %v584 = vld [vmem:[%s9] sm:$0xf]
    %v585 = vld [vmem:[%s9 + $0x4] sm:$0xf]
    %v586 = vld [vmem:[%s9 + $0x8] sm:$0xf]
    %v587 = vld [vmem:[%s9 + $0xc] sm:$0xf]
    %v588 = vld [vmem:[%s10] sm:$0x1]
    %v590 = vlaneseq
    %v591 = vshrl.u32 %v590, 7
    %v592 = vsub.s32 0, %v591
    %v593 = vrot.slane %v588, %v592
    %v599 = vunpack.c.l.b16 %v584
    %v600 = vunpack.c.l.b16 %v585
    %v601 = vunpack.c.l.b16 %v586
    %v602 = vunpack.c.l.b16 %v587
    %v603 = vpack.c.b16 %v600, %v599
    %v604 = vpack.c.b16 %v602, %v601
    %v608 = vsel %vm182, %v583, 0
    %610 = vmatprep.subr.bf16.mxu0 0
    %611 = vmatpush1.bf16.msra.mxu0 0
    %612 = vmatprep.subr.bf16.mxu0 0
    %613 = vmatpush1.bf16.msra.mxu0 0
    %614 = vmatprep.subr.bf16.mxu0 0
    %615 = vmatpush1.bf16.msra.mxu0 0
    %616 = vmatprep.subr.bf16.mxu0 0
    %617 = vmatpush1.bf16.msra.mxu0 0
    %618 = vmatprep.subr.bf16.mxu0 0
    %619 = vmatpush1.bf16.msra.mxu0 0
    %620 = vmatprep.subr.bf16.mxu0 0
    %621 = vmatpush1.bf16.msra.mxu0 0
    %622 = vmatprep.subr.bf16.mxu0 0
    %623 = vmatpush1.bf16.msra.mxu0 %v604
    %624 = vmatprep.subr.bf16.mxu0 0
    %625 = vmatpush1.bf16.msra.mxu0 %v603
    %626 = vmatprep.subr.bf16.mxu0 0
    %627 = vmatpush2.bf16.msra.mxu0 0
    %628 = vmatprep.subr.bf16.mxu0 0
    %629 = vmatpush2.bf16.msra.mxu0 0
    %630 = vmatprep.subr.bf16.mxu0 0
    %631 = vmatpush2.bf16.msra.mxu0 0
    %632 = vmatprep.subr.bf16.mxu0 0
    %633 = vmatpush2.bf16.msra.mxu0 0
    %634 = vmatprep.subr.bf16.mxu0 0
    %635 = vmatpush2.bf16.msra.mxu0 0
    %636 = vmatprep.subr.bf16.mxu0 0
    %637 = vmatpush2.bf16.msra.mxu0 0
    %638 = vmatprep.subr.bf16.mxu0 0
    %639 = vmatpush2.bf16.msra.mxu0 0
    %640 = vmatprep.subr.bf16.mxu0 0
    %641 = vmatpush2.bf16.msra.mxu0 0
    %642 = vmatprep.mubr.bf16.mxu0 0
    %643 = vmatmul.mubr.bf16.gmra.mxu0 %v608
    %v644 = vpop.f32.mrf.mxu0
    %v645 = vadd.f32 %v593, %v644
    %v646 = vpop.f32.mrf.mxu0
    %v647 = vpop.f32.mrf.mxu0
    %v648 = vadd.f32 %v593, %v647
    %v649 = vpop.f32.mrf.mxu0
    %650 = vdwg.mxu0
    %651 = vst.msk [vmem:[#allocation17] sm:$0xff] %vm182, %v645
    %652 = vst.msk [vmem:[#allocation17 + $0x8] sm:$0xff] %vm182, %v648
    // Predicated region
    $region82: #{tpu_custom_call.1} parent=1 // pred_check
      _
    $region83: #{tpu_custom_call.1} parent=1 // pred_check_branch
      %654 = sbr.rel (0) target = $region85
    $region84: #{tpu_custom_call.1} parent=1 // pred_region
      %s656 = ssub.s32 256, 256
      %657 = vsyncadd [#allocation4], %s656
      %s658 = sshll.u32 [#allocation17], 4
      %s659 = int_to_ptr.vmem [resolvable:$true] %s658
      %664 = dma.vmem_to_hbm [thread:$0]  %s659, 256, %s11, [#allocation4], 128, 128, 8
    $region85: #{tpu_custom_call.1} parent=1 // pred_fallthru
      _
    // Predicated region
    $region86: #{tpu_custom_call.1} parent=1 // pred_check
      _
    $region87: #{tpu_custom_call.1} parent=1 // pred_check_branch
      %666 = sbr.rel (0) target = $region89
    $region88: #{tpu_custom_call.1} parent=1 // pred_region
      %667 = dma.done [#allocation4], 256
    $region89: #{tpu_custom_call.1} parent=1 // pred_fallthru
      _
    %668 = vsyncpa [#allocation3], 1
    %669 = vsyncpa [#allocation6], 1
    %670 = vsyncpa [#allocation9], 1
    %671 = vsyncpa [#allocation12], 1
    %672 = vsyncpa [#allocation15], 1
    %673 = vsyncpa [#allocation4], 1

</llo_original>
